<compile_context>
chip_gen: v7x
topology: tpu7x:2x2x1
jax: 0.10.0
libtpu: 0.0.40
codegen_flags: <defaults>
</compile_context>

<pallas_src>
import jax
import jax.numpy as jnp
from jax.experimental import pallas as pl
from jax.experimental.pallas import tpu as pltpu

EPS = 1e-5

# ---- packed-parameter layout: one (N_ROWS, N_COLS) f32 slab ----------------
N_ROWS, N_COLS = 32, 16       # rows padded to a multiple of 8 sublanes
ROW_B1 = 0                    # b1  (16,)  cols 0:16
ROW_G1 = 1                    # g1  (16,)
ROW_BE1 = 2                   # be1 (16,)
ROW_W1 = 3                    # w1  (2,16) rows 3:5
ROW_B2 = 5                    # b2  (8,)   cols 0:8
ROW_G2 = 6                    # g2  (8,)
ROW_BE2 = 7                   # be2 (8,)
ROW_W2 = 8                    # w2  (16,8) rows 8:24 (sublane-aligned)
ROW_W3 = 24                   # w3  as a row (8,) cols 0:8
ROW_B3 = 25                   # b3  scalar at col 0


def _mlp_kernel(x_ref, p_ref, o_ref):
    x = x_ref[...]                                            # (B, 2)

    # --- Linear(2, 16): K=2 -> two broadcast FMAs on the VPU (skip the MXU) ---
    w1a = p_ref[ROW_W1:ROW_W1 + 1, :]                         # (1, 16)
    w1b = p_ref[ROW_W1 + 1:ROW_W1 + 2, :]                     # (1, 16)
    b1 = p_ref[ROW_B1:ROW_B1 + 1, :]                          # (1, 16)
    h = x[:, 0:1] * w1a + x[:, 1:2] * w1b + b1                # (B, 16)

    # --- BatchNorm1d(16), batch statistics (centered term computed once) ---
    g1 = p_ref[ROW_G1:ROW_G1 + 1, :]
    be1 = p_ref[ROW_BE1:ROW_BE1 + 1, :]
    mu = jnp.mean(h, axis=0, keepdims=True)
    d = h - mu
    var = jnp.mean(d * d, axis=0, keepdims=True)              # biased variance
    h = d * jax.lax.rsqrt(var + EPS) * g1 + be1
    h = jnp.maximum(h, 0.0)                                   # ReLU

    # --- Linear(16, 8): the only contraction worth the MXU ---
    w2 = p_ref[ROW_W2:ROW_W2 + 16, 0:8]                       # (16, 8)
    b2 = p_ref[ROW_B2:ROW_B2 + 1, 0:8]                        # (1, 8)
    h = jnp.dot(h, w2, preferred_element_type=jnp.float32) + b2

    # --- BatchNorm1d(8), batch statistics ---
    g2 = p_ref[ROW_G2:ROW_G2 + 1, 0:8]
    be2 = p_ref[ROW_BE2:ROW_BE2 + 1, 0:8]
    mu = jnp.mean(h, axis=0, keepdims=True)
    d = h - mu
    var = jnp.mean(d * d, axis=0, keepdims=True)
    h = d * jax.lax.rsqrt(var + EPS) * g2 + be2
    h = jnp.maximum(h, 0.0)                                   # ReLU

    # --- Linear(8, 1): N=1 -> elementwise mul + lane reduction (VPU/XLU) ---
    w3r = p_ref[ROW_W3:ROW_W3 + 1, 0:8]                       # (1, 8)
    b3 = p_ref[ROW_B3:ROW_B3 + 1, 0:1]                        # (1, 1)
    o_ref[...] = (jnp.sum(h * w3r, axis=-1, keepdims=True) + b3).astype(o_ref.dtype)


def mymodel_forward(x, packed_params):
    B = x.shape[0]
    vmem = pl.BlockSpec(memory_space=pltpu.MemorySpace.VMEM)
    return pl.pallas_call(
        _mlp_kernel,
        out_shape=jax.ShapeDtypeStruct((B, 1), jnp.float32),
        in_specs=[vmem, vmem],      # 2 DMAs total: activations + packed params
        out_specs=vmem,
    )(x, packed_params)


def pack_params(params):
    """Pack the 10 parameter tensors into one (32, 16) f32 VMEM slab (done once)."""
    (w1, b1, g1, be1, w2, b2, g2, be2, w3, b3) = params
    p = jnp.zeros((N_ROWS, N_COLS), jnp.float32)
    p = p.at[ROW_B1, :16].set(b1.reshape(16))
    p = p.at[ROW_G1, :16].set(g1.reshape(16))
    p = p.at[ROW_BE1, :16].set(be1.reshape(16))
    p = p.at[ROW_W1:ROW_W1 + 2, :16].set(w1)
    p = p.at[ROW_B2, :8].set(b2.reshape(8))
    p = p.at[ROW_G2, :8].set(g2.reshape(8))
    p = p.at[ROW_BE2, :8].set(be2.reshape(8))
    p = p.at[ROW_W2:ROW_W2 + 16, :8].set(w2)
    p = p.at[ROW_W3, :8].set(w3.reshape(8))
    p = p.at[ROW_B3, 0].set(b3.reshape(()))
    return p


def init_params(key):
    """Deterministic init matching PyTorch defaults in shape/semantics.

    Linear: U(-1/sqrt(fan_in), 1/sqrt(fan_in)) for weight and bias.
    BatchNorm1d: gamma = 1, beta = 0.
    """
    ks = jax.random.split(key, 6)

    def linear(kw, kb, fan_in, fan_out):
        bound = 1.0 / jnp.sqrt(float(fan_in))
        w = jax.random.uniform(kw, (fan_in, fan_out), jnp.float32, -bound, bound)
        b = jax.random.uniform(kb, (1, fan_out), jnp.float32, -bound, bound)
        return w, b

    w1, b1 = linear(ks[0], ks[1], 2, 16)
    w2, b2 = linear(ks[2], ks[3], 16, 8)
    w3, b3 = linear(ks[4], ks[5], 8, 1)

    g1 = jnp.ones((1, 16), jnp.float32)
    be1 = jnp.zeros((1, 16), jnp.float32)
    g2 = jnp.ones((1, 8), jnp.float32)
    be2 = jnp.zeros((1, 8), jnp.float32)

    return (w1, b1, g1, be1, w2, b2, g2, be2, w3, b3)


def _reference(x, params):
    (w1, b1, g1, be1, w2, b2, g2, be2, w3, b3) = params

    def bn(h, g, be):
        mu = jnp.mean(h, axis=0, keepdims=True)
        var = jnp.mean((h - mu) ** 2, axis=0, keepdims=True)
        return (h - mu) / jnp.sqrt(var + EPS) * g + be

    h = jnp.maximum(bn(x @ w1 + b1, g1, be1), 0.0)
    h = jnp.maximum(bn(h @ w2 + b2, g2, be2), 0.0)
    return h @ w3 + b3


if __name__ == "__main__":
    key = jax.random.PRNGKey(0)
    k_x, k_p = jax.random.split(key)

    B = 8  # batch size (>1 required for BatchNorm batch statistics)
    x = jax.random.normal(k_x, (B, 2), jnp.float32)
    params = init_params(k_p)
    packed = pack_params(params)

    out = mymodel_forward(x, packed)
    out = jax.block_until_ready(out)

    ref = _reference(x, params)
    assert out.shape == (B, 1)
    assert jnp.allclose(out, ref, atol=1e-5, rtol=1e-5)

    print("KERNEL_OK")
</pallas_src>

<mosaic_0001>
module attributes {stable_mosaic.version = 11 : i64} {
  func.func @_mlp_kernel(%arg0: memref<8x2xf32, #tpu.memory_space<vmem>>, %arg1: memref<32x16xf32, #tpu.memory_space<vmem>>, %arg2: memref<8x1xf32, #tpu.memory_space<vmem>>) attributes {dimension_semantics = [], scalar_prefetch = 0 : i64, scratch_operands = 0 : i64, tpu.core_type = #tpu.core_type<tc>} {
    %c0 = arith.constant 0 : index
    %c0_0 = arith.constant 0 : index
    %0 = vector.load %arg0[%c0, %c0_0] : memref<8x2xf32, #tpu.memory_space<vmem>>, vector<8x2xf32>
    %c3 = arith.constant 3 : index
    %c0_1 = arith.constant 0 : index
    %1 = vector.load %arg1[%c3, %c0_1] : memref<32x16xf32, #tpu.memory_space<vmem>>, vector<1x16xf32>
    %c4 = arith.constant 4 : index
    %c0_2 = arith.constant 0 : index
    %2 = vector.load %arg1[%c4, %c0_2] : memref<32x16xf32, #tpu.memory_space<vmem>>, vector<1x16xf32>
    %c0_3 = arith.constant 0 : index
    %c0_4 = arith.constant 0 : index
    %3 = vector.load %arg1[%c0_3, %c0_4] : memref<32x16xf32, #tpu.memory_space<vmem>>, vector<1x16xf32>
    %4 = vector.extract_strided_slice %0 {offsets = [0, 0], sizes = [8, 1], strides = [1, 1]} : vector<8x2xf32> to vector<8x1xf32>
    %5 = vector.broadcast %4 : vector<8x1xf32> to vector<8x16xf32>
    %6 = vector.broadcast %1 : vector<1x16xf32> to vector<8x16xf32>
    %7 = arith.mulf %5, %6 : vector<8x16xf32>
    %8 = vector.extract_strided_slice %0 {offsets = [0, 1], sizes = [8, 1], strides = [1, 1]} : vector<8x2xf32> to vector<8x1xf32>
    %9 = vector.broadcast %8 : vector<8x1xf32> to vector<8x16xf32>
    %10 = vector.broadcast %2 : vector<1x16xf32> to vector<8x16xf32>
    %11 = arith.mulf %9, %10 : vector<8x16xf32>
    %12 = arith.addf %7, %11 : vector<8x16xf32>
    %13 = vector.broadcast %3 : vector<1x16xf32> to vector<8x16xf32>
    %14 = arith.addf %12, %13 : vector<8x16xf32>
    %c1 = arith.constant 1 : index
    %c0_5 = arith.constant 0 : index
    %15 = vector.load %arg1[%c1, %c0_5] : memref<32x16xf32, #tpu.memory_space<vmem>>, vector<1x16xf32>
    %c2 = arith.constant 2 : index
    %c0_6 = arith.constant 0 : index
    %16 = vector.load %arg1[%c2, %c0_6] : memref<32x16xf32, #tpu.memory_space<vmem>>, vector<1x16xf32>
    %cst = arith.constant dense<0.000000e+00> : vector<16xf32>
    %17 = vector.multi_reduction <add>, %14, %cst [0] : vector<8x16xf32> to vector<16xf32>
    %18 = vector.shape_cast %17 : vector<16xf32> to vector<1x16xf32>
    %cst_7 = arith.constant 8.000000e+00 : f32
    %19 = vector.broadcast %cst_7 : f32 to vector<1x16xf32>
    %20 = arith.divf %18, %19 : vector<1x16xf32>
    %21 = vector.broadcast %20 : vector<1x16xf32> to vector<8x16xf32>
    %22 = arith.subf %14, %21 : vector<8x16xf32>
    %23 = arith.mulf %22, %22 : vector<8x16xf32>
    %cst_8 = arith.constant dense<0.000000e+00> : vector<16xf32>
    %24 = vector.multi_reduction <add>, %23, %cst_8 [0] : vector<8x16xf32> to vector<16xf32>
    %25 = vector.shape_cast %24 : vector<16xf32> to vector<1x16xf32>
    %cst_9 = arith.constant 8.000000e+00 : f32
    %26 = vector.broadcast %cst_9 : f32 to vector<1x16xf32>
    %27 = arith.divf %25, %26 : vector<1x16xf32>
    %cst_10 = arith.constant 9.99999974E-6 : f32
    %28 = vector.broadcast %cst_10 : f32 to vector<1x16xf32>
    %29 = arith.addf %27, %28 : vector<1x16xf32>
    %30 = math.rsqrt %29 : vector<1x16xf32>
    %31 = vector.broadcast %30 : vector<1x16xf32> to vector<8x16xf32>
    %32 = arith.mulf %22, %31 : vector<8x16xf32>
    %33 = vector.broadcast %15 : vector<1x16xf32> to vector<8x16xf32>
    %34 = arith.mulf %32, %33 : vector<8x16xf32>
    %35 = vector.broadcast %16 : vector<1x16xf32> to vector<8x16xf32>
    %36 = arith.addf %34, %35 : vector<8x16xf32>
    %cst_11 = arith.constant 0.000000e+00 : f32
    %37 = vector.broadcast %cst_11 : f32 to vector<8x16xf32>
    %38 = arith.maximumf %36, %37 : vector<8x16xf32>
    %c8 = arith.constant 8 : index
    %c0_12 = arith.constant 0 : index
    %39 = vector.load %arg1[%c8, %c0_12] : memref<32x16xf32, #tpu.memory_space<vmem>>, vector<16x8xf32>
    %c5 = arith.constant 5 : index
    %c0_13 = arith.constant 0 : index
    %40 = vector.load %arg1[%c5, %c0_13] : memref<32x16xf32, #tpu.memory_space<vmem>>, vector<1x8xf32>
    %cst_14 = arith.constant dense<0.000000e+00> : vector<8x8xf32>
    %41 = tpu.matmul %38, %39, %cst_14 {dimension_numbers = #tpu.dot_dimension_numbers<[1], [0], [0], [1], [0, 0, 1, 1], [], []>} : vector<8x16xf32>, vector<16x8xf32>, vector<8x8xf32> -> vector<8x8xf32>
    %42 = vector.broadcast %40 : vector<1x8xf32> to vector<8x8xf32>
    %43 = arith.addf %41, %42 : vector<8x8xf32>
    %c6 = arith.constant 6 : index
    %c0_15 = arith.constant 0 : index
    %44 = vector.load %arg1[%c6, %c0_15] : memref<32x16xf32, #tpu.memory_space<vmem>>, vector<1x8xf32>
    %c7 = arith.constant 7 : index
    %c0_16 = arith.constant 0 : index
    %45 = vector.load %arg1[%c7, %c0_16] : memref<32x16xf32, #tpu.memory_space<vmem>>, vector<1x8xf32>
    %cst_17 = arith.constant dense<0.000000e+00> : vector<8xf32>
    %46 = vector.multi_reduction <add>, %43, %cst_17 [0] : vector<8x8xf32> to vector<8xf32>
    %47 = vector.shape_cast %46 : vector<8xf32> to vector<1x8xf32>
    %cst_18 = arith.constant 8.000000e+00 : f32
    %48 = vector.broadcast %cst_18 : f32 to vector<1x8xf32>
    %49 = arith.divf %47, %48 : vector<1x8xf32>
    %50 = vector.broadcast %49 : vector<1x8xf32> to vector<8x8xf32>
    %51 = arith.subf %43, %50 : vector<8x8xf32>
    %52 = arith.mulf %51, %51 : vector<8x8xf32>
    %cst_19 = arith.constant dense<0.000000e+00> : vector<8xf32>
    %53 = vector.multi_reduction <add>, %52, %cst_19 [0] : vector<8x8xf32> to vector<8xf32>
    %54 = vector.shape_cast %53 : vector<8xf32> to vector<1x8xf32>
    %cst_20 = arith.constant 8.000000e+00 : f32
    %55 = vector.broadcast %cst_20 : f32 to vector<1x8xf32>
    %56 = arith.divf %54, %55 : vector<1x8xf32>
    %cst_21 = arith.constant 9.99999974E-6 : f32
    %57 = vector.broadcast %cst_21 : f32 to vector<1x8xf32>
    %58 = arith.addf %56, %57 : vector<1x8xf32>
    %59 = math.rsqrt %58 : vector<1x8xf32>
    %60 = vector.broadcast %59 : vector<1x8xf32> to vector<8x8xf32>
    %61 = arith.mulf %51, %60 : vector<8x8xf32>
    %62 = vector.broadcast %44 : vector<1x8xf32> to vector<8x8xf32>
    %63 = arith.mulf %61, %62 : vector<8x8xf32>
    %64 = vector.broadcast %45 : vector<1x8xf32> to vector<8x8xf32>
    %65 = arith.addf %63, %64 : vector<8x8xf32>
    %cst_22 = arith.constant 0.000000e+00 : f32
    %66 = vector.broadcast %cst_22 : f32 to vector<8x8xf32>
    %67 = arith.maximumf %65, %66 : vector<8x8xf32>
    %c24 = arith.constant 24 : index
    %c0_23 = arith.constant 0 : index
    %68 = vector.load %arg1[%c24, %c0_23] : memref<32x16xf32, #tpu.memory_space<vmem>>, vector<1x8xf32>
    %c25 = arith.constant 25 : index
    %c0_24 = arith.constant 0 : index
    %69 = vector.load %arg1[%c25, %c0_24] : memref<32x16xf32, #tpu.memory_space<vmem>>, vector<1x1xf32>
    %70 = vector.broadcast %68 : vector<1x8xf32> to vector<8x8xf32>
    %71 = arith.mulf %67, %70 : vector<8x8xf32>
    %cst_25 = arith.constant dense<0.000000e+00> : vector<8xf32>
    %72 = vector.multi_reduction <add>, %71, %cst_25 [1] : vector<8x8xf32> to vector<8xf32>
    %73 = vector.shape_cast %72 : vector<8xf32> to vector<8x1xf32>
    %74 = vector.broadcast %69 : vector<1x1xf32> to vector<8x1xf32>
    %75 = arith.addf %73, %74 : vector<8x1xf32>
    %c0_26 = arith.constant 0 : index
    %c0_27 = arith.constant 0 : index
    %76 = vector.load %arg2[%c0_26, %c0_27] : memref<8x1xf32, #tpu.memory_space<vmem>>, vector<8x1xf32>
    tpu.vector_store %arg2[%c0_26, %c0_27], %75 {strides = array<i32>} : memref<8x1xf32, #tpu.memory_space<vmem>>, vector<8x1xf32>,
    return
  }
}

</mosaic_0001>

<llo_original>
// kernel: tpu_custom_call.1
$region0: #{tpu_custom_call.1}
  #allocation0 [shape = 'u32[]', space=smem, size = 0x4, offset = 0x4, fixed_abs, tag = 'smem constant byte address 0x4 - core index']
  #allocation1 [shape = 'u32[144,128]{1,0:T(1,128)}', space=vmem, size = 0x12000, scoped, tag = 'internal scratch']
  %s0 = inlined_call_operand.vmem [shape: f32[8,2], index: 0, kind: input, shape index: {}]
  %s1 = inlined_call_operand.vmem [shape: f32[32,16], index: 1, kind: input, shape index: {}]
  %s2 = inlined_call_operand.vmem [shape: f32[8,1], index: 2, kind: output, shape index: {}]
  %s3 = sld [smem:[#allocation0]]
  $region18: #{tpu_custom_call.1} parent=0
    _
  %s5 = ssub.s32 1, %s3
  %s6 = scalar_select 0, %s5, %s3
  // Predicated region
  $region2: #{tpu_custom_call.1} parent=0 // pred_check
    _
  $region3: #{tpu_custom_call.1} parent=0 // pred_check_branch
    %8 = sbr.rel (0) target = $region5
  $region4: #{tpu_custom_call.1} parent=0 // pred_region
    _
  $region5: #{tpu_custom_call.1} parent=0 // pred_fallthru
    _
  // Predicated region
  $region6: #{tpu_custom_call.1} parent=0 // pred_check
    _
  $region7: #{tpu_custom_call.1} parent=0 // pred_check_branch
    %10 = sbr.rel (0) target = $region9
  $region8: #{tpu_custom_call.1} parent=0 // pred_region
    _
  $region9: #{tpu_custom_call.1} parent=0 // pred_fallthru
    _
  %v11 = vld [vmem:[%s0] sm:$0xff]
  %v12 = vld [vmem:[%s1 + $0x3] sm:$0x1]
  %v13 = vld [vmem:[%s1 + $0x4] sm:$0x1]
  %v14 = vld [vmem:[%s1] sm:$0x1]
  %16 = vset.pattern.permute.xlu0 0
  %17 = vperm.xlu0 %16, %v11
  %v18 = vpop.permute.xlu0 %17
  %v20 = vlaneseq
  %v21 = vshrl.u32 %v20, 7
  %v22 = vsub.s32 0, %v21
  %v23 = vrot.slane %v12, %v22
  %v24 = vmul.f32 %v18, %v23
  %25 = vset.pattern.permute.xlu0 1
  %26 = vperm.xlu0 %25, %v11
  %v27 = vpop.permute.xlu0 %26
  %v29 = vlaneseq
  %v30 = vshrl.u32 %v29, 7
  %v31 = vsub.s32 0, %v30
  %v32 = vrot.slane %v13, %v31
  %v33 = vmul.f32 %v27, %v32
  %v34 = vadd.f32 %v24, %v33
  %v35 = vlaneseq
  %v36 = vshrl.u32 %v35, 7
  %v37 = vsub.s32 0, %v36
  %v38 = vrot.slane %v14, %v37
  %v39 = vadd.f32 %v34, %v38
  %v40 = vld [vmem:[%s1 + $0x1] sm:$0x1]
  %v41 = vld [vmem:[%s1 + $0x2] sm:$0x1]
  %vm42 = vcmask 130048
  %v43 = vsel %vm42, %v39, 0.0
  %v44 = vrot.slane %v43, 4
  %v45 = vadd.f32 %v43, %v44
  %v46 = vrot.slane %v45, 2
  %v47 = vadd.f32 %v45, %v46
  %v48 = vrot.slane %v47, 1
  %v49 = vadd.f32 %v47, %v48
  %v50 = vrcp.pop 8.0
  %v51 = vmul.f32 %v49, %v50
  %v52 = vsub.f32 %v39, %v51
  %v53 = vmul.f32 %v52, %v52
  %v54 = vsel %vm42, %v53, 0.0
  %v55 = vrot.slane %v54, 4
  %v56 = vadd.f32 %v54, %v55
  %v57 = vrot.slane %v56, 2
  %v58 = vadd.f32 %v56, %v57
  %v59 = vrot.slane %v58, 1
  %v60 = vadd.f32 %v58, %v59
  %v61 = vmul.f32 %v60, %v50
  %v62 = vadd.f32 %v61, 1e-05
  %v63 = vrsqrt.pop %v62
  %v64 = vmul.f32 %v52, %v63
  %v65 = vlaneseq
  %v66 = vshrl.u32 %v65, 7
  %v67 = vsub.s32 0, %v66
  %v68 = vrot.slane %v40, %v67
  %v69 = vmul.f32 %v64, %v68
  %v70 = vlaneseq
  %v71 = vshrl.u32 %v70, 7
  %v72 = vsub.s32 0, %v71
  %v73 = vrot.slane %v41, %v72
  %v74 = vadd.f32 %v69, %v73
  %v75 = vmax.f32 %v74, 0.0
  %v76 = vld [vmem:[%s1 + $0x8] sm:$0xff]
  %v77 = vld [vmem:[%s1 + $0x10] sm:$0xff]
  %v78 = vld [vmem:[%s1 + $0x5] sm:$0x1]
  %v79 = vlaneseq
  %v80 = vshrl.u32 %v79, 7
  %v81 = vsub.s32 0, %v80
  %v82 = vrot.slane %v78, %v81
  %v84 = vsel %vm42, %v75, 0
  %86 = vmatprep.subr.mxu0 0.0
  %87 = vmatpush1.msra.mxu0 %v76
  %88 = vmatprep.subr.mxu0 0.0
  %89 = vmatpush1.msra.mxu0 %v77
  %90 = vmatprep.subr.mxu0 0.0
  %91 = vmatpush1.msra.mxu0 0.0
  %92 = vmatprep.subr.mxu0 0.0
  %93 = vmatpush1.msra.mxu0 0.0
  %94 = vmatprep.subr.mxu0 0.0
  %95 = vmatpush1.msra.mxu0 0.0
  %96 = vmatprep.subr.mxu0 0.0
  %97 = vmatpush1.msra.mxu0 0.0
  %98 = vmatprep.subr.mxu0 0.0
  %99 = vmatpush1.msra.mxu0 0.0
  %100 = vmatprep.subr.mxu0 0.0
  %101 = vmatpush1.msra.mxu0 0.0
  %102 = vmatprep.subr.mxu0 0.0
  %103 = vmatpush1.msra.mxu0 0.0
  %104 = vmatprep.subr.mxu0 0.0
  %105 = vmatpush1.msra.mxu0 0.0
  %106 = vmatprep.subr.mxu0 0.0
  %107 = vmatpush1.msra.mxu0 0.0
  %108 = vmatprep.subr.mxu0 0.0
  %109 = vmatpush1.msra.mxu0 0.0
  %110 = vmatprep.subr.mxu0 0.0
  %111 = vmatpush1.msra.mxu0 0.0
  %112 = vmatprep.subr.mxu0 0.0
  %113 = vmatpush1.msra.mxu0 0.0
  %114 = vmatprep.subr.mxu0 0.0
  %115 = vmatpush1.msra.mxu0 0.0
  %116 = vmatprep.subr.mxu0 0.0
  %117 = vmatpush1.msra.mxu0 0.0
  %118 = vmatprep.subr.mxu0 0.0
  %119 = vmatpush1.msra.mxu0 0.0
  %120 = vmatprep.subr.mxu0 0.0
  %121 = vmatpush1.msra.mxu0 0.0
  %122 = vmatprep.subr.mxu0 0.0
  %123 = vmatpush1.msra.mxu0 0.0
  %124 = vmatprep.subr.mxu0 0.0
  %125 = vmatpush1.msra.mxu0 0.0
  %126 = vmatprep.subr.mxu0 0.0
  %127 = vmatpush1.msra.mxu0 0.0
  %128 = vmatprep.subr.mxu0 0.0
  %129 = vmatpush1.msra.mxu0 0.0
  %130 = vmatprep.subr.mxu0 0.0
  %131 = vmatpush1.msra.mxu0 0.0
  %132 = vmatprep.subr.mxu0 0.0
  %133 = vmatpush1.msra.mxu0 0.0
  %134 = vmatprep.subr.mxu0 0.0
  %135 = vmatpush1.msra.mxu0 0.0
  %136 = vmatprep.subr.mxu0 0.0
  %137 = vmatpush1.msra.mxu0 0.0
  %138 = vmatprep.subr.mxu0 0.0
  %139 = vmatpush1.msra.mxu0 0.0
  %140 = vmatprep.subr.mxu0 0.0
  %141 = vmatpush1.msra.mxu0 0.0
  %142 = vmatprep.subr.mxu0 0.0
  %143 = vmatpush1.msra.mxu0 0.0
  %144 = vmatprep.subr.mxu0 0.0
  %145 = vmatpush1.msra.mxu0 0.0
  %146 = vmatprep.subr.mxu0 0.0
  %147 = vmatpush1.msra.mxu0 0.0
  %148 = vmatprep.subr.mxu0 0.0
  %149 = vmatpush1.msra.mxu0 0.0
  %150 = vmatprep.mubr.f32.mxu0 0.0
  %151 = vmatmul.mubr.f32.gmra.mrb[0].mxu0 %v84
  %v152 = vpop.f32.mrb[0].mxu0
  %v153 = vadd.f32 %v82, %v152
  %v154 = vpop.f32.mrb[0].mxu0
  %155 = vdwg.mxu0
  %v156 = vld [vmem:[%s1 + $0x6] sm:$0x1]
  %v157 = vld [vmem:[%s1 + $0x7] sm:$0x1]
  %vm158 = vcmask 64512
  %v159 = vsel %vm158, %v153, 0.0
  %v160 = vrot.slane %v159, 4
  %v161 = vadd.f32 %v159, %v160
  %v162 = vrot.slane %v161, 2
  %v163 = vadd.f32 %v161, %v162
  %v164 = vrot.slane %v163, 1
  %v165 = vadd.f32 %v163, %v164
  %v166 = vmul.f32 %v165, %v50
  %v167 = vsub.f32 %v153, %v166
  %v168 = vmul.f32 %v167, %v167
  %v169 = vsel %vm158, %v168, 0.0
  %v170 = vrot.slane %v169, 4
  %v171 = vadd.f32 %v169, %v170
  %v172 = vrot.slane %v171, 2
  %v173 = vadd.f32 %v171, %v172
  %v174 = vrot.slane %v173, 1
  %v175 = vadd.f32 %v173, %v174
  %v176 = vmul.f32 %v175, %v50
  %v177 = vadd.f32 %v176, 1e-05
  %v178 = vrsqrt.pop %v177
  %v179 = vmul.f32 %v167, %v178
  %v180 = vlaneseq
  %v181 = vshrl.u32 %v180, 7
  %v182 = vsub.s32 0, %v181
  %v183 = vrot.slane %v156, %v182
  %v184 = vmul.f32 %v179, %v183
  %v185 = vlaneseq
  %v186 = vshrl.u32 %v185, 7
  %v187 = vsub.s32 0, %v186
  %v188 = vrot.slane %v157, %v187
  %v189 = vadd.f32 %v184, %v188
  %v190 = vmax.f32 %v189, 0.0
  %v191 = vld [vmem:[%s1 + $0x18] sm:$0x1]
  %v192 = vld [vmem:[%s1 + $0x19] sm:$0x1]
  %v193 = vlaneseq
  %v194 = vshrl.u32 %v193, 7
  %v195 = vsub.s32 0, %v194
  %v196 = vrot.slane %v191, %v195
  %v197 = vmul.f32 %v190, %v196
  %v198 = vsel %vm158, %v197, 0.0
  %199 = vadd.xlane.f32.xlu0 %v198
  %v200 = vpop.xlane.xlu0 %199
  %v201 = vlaneseq
  %v202 = vshrl.u32 %v201, 7
  %v203 = vsub.s32 0, %v202
  %v204 = vrot.slane %v192, %v203
  %v205 = vadd.f32 %v200, %v204
  %vm206 = vcmask 7168
  %207 = vst.msk [vmem:[%s2] sm:$0xff] %vm206, %v205
  // Predicated region
  $region10: #{tpu_custom_call.1} parent=0 // pred_check
    _
  $region11: #{tpu_custom_call.1} parent=0 // pred_check_branch
    %209 = sbr.rel (0) target = $region13
  $region12: #{tpu_custom_call.1} parent=0 // pred_region
    _
  $region13: #{tpu_custom_call.1} parent=0 // pred_fallthru
    _
  // Predicated region
  $region14: #{tpu_custom_call.1} parent=0 // pred_check
    _
  $region15: #{tpu_custom_call.1} parent=0 // pred_check_branch
    %211 = sbr.rel (0) target = $region17
  $region16: #{tpu_custom_call.1} parent=0 // pred_region
    _
  $region17: #{tpu_custom_call.1} parent=0 // pred_fallthru
    _

</llo_original>
